<compile_context>
chip_gen: v5e
topology: v5e:2x2
jax: 0.10.0
libtpu: 0.0.40
codegen_flags: <defaults>
</compile_context>

<pallas_src>
from functools import partial

import jax
import jax.numpy as jnp
from jax.experimental import pallas as pl
from jax.experimental.pallas import tpu as pltpu

bit_alpha = {1: 1.2221, 2: 0.6511, 4: 0.1946}

_TARGET_BLOCK_BYTES = 4 * 1024 * 1024          # ~4 MiB per tile (v6e/v7x sweet spot)
_SINGLE_BLOCK_BYTES = 256 * 1024               # at/below this, one block is fine
_VMEM_LIMIT_BYTES = 48 * 1024 * 1024           # safe on v5e/v6e (128 MiB) and v7x (64 MiB)
_COL_CANDIDATES = (8192, 4096, 2048, 1024, 512, 256, 128)


def _cdiv(a, b):
    return -(-a // b)


# --------------------------------------------------------------------------- kernel
def _qtuni_kernel(scal_ref, x_ref, o_ref, *, fw_quant: bool, level: int):
    # scal_ref is a (2,) f32 SMEM vector: [a_clamped, 1/a_clamped] (prepped in wrapper).
    x = x_ref[...]
    if fw_quant:
        a = scal_ref[0]
        inv_a = scal_ref[1]
        xf = x.astype(jnp.float32)
        # clip(ceil(x * (1/a)), 0, level) * a  ==  the PyTorch masked-assignment chain:
        #   x <= 0                      -> 0
        #   0 < x <= a*(level-1)        -> ceil(x/a)*a
        #   x > a*(level-1)             -> a*level
        q = jnp.clip(jnp.ceil(xf * inv_a), 0.0, float(level)) * a
        o_ref[...] = q.astype(o_ref.dtype)
    else:
        # Pure ReLU path: out[input <= 0] = 0
        o_ref[...] = jnp.maximum(x, jnp.zeros_like(x))


# --------------------------------------------------------------------------- layout
def _pick_layout(n, itemsize):
    """n must be a multiple of 128.  Returns (rows, cols, block_rows, grid) for a
    copy-free (rows, cols) view of the flat tensor.  Blocks are lane-dense
    (cols a multiple of 128), block_rows is a multiple of the native sublane tile
    (or the full extent), and tensors above _SINGLE_BLOCK_BYTES are split into at
    least 2 (preferably an even number of) blocks so both TensorCores get work."""
    sub = max(8, 32 // itemsize)               # native sublane tile: f32 8, bf16 16, i8 32
    total_bytes = n * itemsize
    small = total_bytes <= _SINGLE_BLOCK_BYTES

    cols = 128                                 # always divides (n is a multiple of 128)
    for c in _COL_CANDIDATES:
        if n % c == 0 and (small or n // c >= 2 * sub):
            cols = c
            break
    rows = n // cols

    if small or rows < 2 * sub:
        return rows, cols, rows, 1             # single full-extent block

    max_rows = max(sub, (_TARGET_BLOCK_BYTES // (cols * itemsize)) // sub * sub)
    grid = max(2, _cdiv(rows, max_rows))       # never a length-1 grid for big tensors
    grid += grid % 2                           # even count -> balanced megacore split
    block_rows = _cdiv(_cdiv(rows, grid), sub) * sub
    grid = _cdiv(rows, block_rows)             # last block may be partial (Pallas masks it)
    return rows, cols, block_rows, grid


# --------------------------------------------------------------------------- driver
def _run(x2d, scal, block_rows, grid, fw_quant, level):
    rows, cols = x2d.shape
    kernel = partial(_qtuni_kernel, fw_quant=fw_quant, level=level)
    return pl.pallas_call(
        kernel,
        out_shape=jax.ShapeDtypeStruct((rows, cols), x2d.dtype),
        grid=(grid,),
        in_specs=[
            pl.BlockSpec(memory_space=pltpu.MemorySpace.SMEM),     # (2,) [a, 1/a] scalars
            pl.BlockSpec((block_rows, cols), lambda i: (i, 0)),    # lane-dense x tile
        ],
        out_specs=pl.BlockSpec((block_rows, cols), lambda i: (i, 0)),
        compiler_params=pltpu.CompilerParams(
            dimension_semantics=("parallel",),                     # megacore sharding
            vmem_limit_bytes=_VMEM_LIMIT_BYTES,
        ),
    )(scal, x2d)


def _tail_math(x, a, fw_quant, level):
    """Plain-jnp math for the rare < 128-element tail (element count not %128)."""
    if fw_quant:
        q = jnp.clip(jnp.ceil(x.astype(jnp.float32) / a), 0.0, float(level)) * a
        return q.astype(x.dtype)
    return jnp.maximum(x, jnp.zeros_like(x))


def qtuni_forward(x, alpha, *, bit: int, ffun: str = "relu"):
    """Pallas implementation of QtUni.forward.

    x     : any-shape float array (NCHW in the tests), kept in its native dtype
    alpha : shape-(1,) float scalar parameter
    """
    level = 2 ** bit - 1
    fw_quant = (ffun == "quant")

    # Hoisted scalar prep (matches alpha.data.clamp(0.001, 5)).
    a = jnp.clip(alpha.reshape(-1)[0].astype(jnp.float32), 0.001, 5.0)
    scal = jnp.stack([a, 1.0 / a]).astype(jnp.float32)

    orig_shape = x.shape
    n = x.size
    itemsize = jnp.dtype(x.dtype).itemsize

    n_main = (n // 128) * 128
    if n_main == n:
        rows, cols, block_rows, grid = _pick_layout(n, itemsize)
        out2d = _run(x.reshape(rows, cols), scal, block_rows, grid, fw_quant, level)
        return out2d.reshape(orig_shape)

    # Rare fallback: element count not a multiple of 128.
    # Kernel on the 128-aligned prefix, tiny tail in plain jnp (1x traffic on the bulk).
    flat = x.reshape(-1)
    parts = []
    if n_main:
        rows, cols, block_rows, grid = _pick_layout(n_main, itemsize)
        parts.append(
            _run(flat[:n_main].reshape(rows, cols), scal, block_rows, grid,
                 fw_quant, level).reshape(-1))
    parts.append(_tail_math(flat[n_main:], a, fw_quant, level))
    out = parts[0] if len(parts) == 1 else jnp.concatenate(parts)
    return out.reshape(orig_shape)


# --------------------------------------------------------------------------- reference
def qtuni_ref(x, alpha, *, bit: int, ffun: str = "relu"):
    """Pure-JAX reference mirroring the PyTorch forward exactly (exact divide)."""
    level = 2 ** bit - 1
    a = jnp.clip(alpha.reshape(-1)[0], 0.001, 5.0)
    out = jnp.where(x > 0, x, jnp.zeros_like(x))
    if ffun == "quant":
        thresh = a * (level - 1)
        q = jnp.ceil(x / a) * a
        out = jnp.where((x > 0) & (x <= thresh), q, out)
        out = jnp.where(x > thresh, a * level, out)
    return out


def _check_quant(out, ref, x, a, name):
    """Elementwise match, tolerating the known 1-ulp reciprocal-vs-divide ceil flip:
    mismatches are only allowed where x/a sits (to float precision) on a bin
    boundary, and then must be at most one quantization level (== a)."""
    diff = jnp.abs(out.astype(jnp.float32) - ref.astype(jnp.float32))
    exact = diff <= 1e-5
    t = x.astype(jnp.float32) / a
    near_edge = jnp.abs(t - jnp.round(t)) <= 8e-6 * jnp.maximum(jnp.abs(t), 1.0)
    one_level = diff <= a + 1e-5
    assert bool(jnp.all(exact | (near_edge & one_level))), f"{name}: quant path mismatch"


# --------------------------------------------------------------------------- self-test
if __name__ == "__main__":
    key = jax.random.PRNGKey(0)
    k1, k2, k3 = jax.random.split(key, 3)

    bit = 2
    level = 2 ** bit - 1
    alpha = jnp.ones((1,), dtype=jnp.float32) * bit_alpha[bit]    # reset_parameters()
    a_c = float(jnp.clip(alpha[0], 0.001, 5.0))

    # --- case 1: module-default small NCHW activation, ReLU + quant paths ---
    x = jax.random.normal(k1, (2, 4, 16, 16), dtype=jnp.float32)
    out_relu = qtuni_forward(x, alpha, bit=bit, ffun="relu")
    jax.block_until_ready(out_relu)
    assert jnp.allclose(out_relu, qtuni_ref(x, alpha, bit=bit, ffun="relu"),
                        atol=1e-6), "relu path mismatch"

    out_q = qtuni_forward(x, alpha, bit=bit, ffun="quant")
    jax.block_until_ready(out_q)
    _check_quant(out_q, qtuni_ref(x, alpha, bit=bit, ffun="quant"), x, a_c, "small")

    # --- case 2: larger activation -> multi-block grid (megacore) + partial last block ---
    x2 = jax.random.normal(k2, (2, 32, 56, 56), dtype=jnp.float32)
    out2 = qtuni_forward(x2, alpha, bit=bit, ffun="quant")
    jax.block_until_ready(out2)
    _check_quant(out2, qtuni_ref(x2, alpha, bit=bit, ffun="quant"), x2, a_c, "large")

    # --- case 3: element count not a multiple of 128 -> prefix kernel + jnp tail ---
    x3 = jax.random.normal(k3, (3, 5, 7, 11), dtype=jnp.float32)
    out3 = qtuni_forward(x3, alpha, bit=bit, ffun="quant")
    jax.block_until_ready(out3)
    _check_quant(out3, qtuni_ref(x3, alpha, bit=bit, ffun="quant"), x3, a_c, "tail")

    # --- case 4: 4-bit quantization (level = 15) ---
    bit4 = 4
    alpha4 = jnp.ones((1,), dtype=jnp.float32) * bit_alpha[bit4]
    a_c4 = float(jnp.clip(alpha4[0], 0.001, 5.0))
    out4 = qtuni_forward(x, alpha4, bit=bit4, ffun="quant")
    jax.block_until_ready(out4)
    _check_quant(out4, qtuni_ref(x, alpha4, bit=bit4, ffun="quant"), x, a_c4, "bit4")

    print("KERNEL_OK")
</pallas_src>

<mosaic_0001>
module attributes {stable_mosaic.version = 11 : i64} {
  func.func @_qtuni_kernel(%arg0: i32, %arg1: memref<2xf32, #tpu.memory_space<smem>>, %arg2: memref<1x2048xf32, #tpu.memory_space<vmem>>, %arg3: memref<1x2048xf32, #tpu.memory_space<vmem>>) attributes {dimension_semantics = [#tpu.dimension_semantics<parallel>], iteration_bounds = array<i64: 1>, scalar_prefetch = 0 : i64, scratch_operands = 0 : i64, tpu.core_type = #tpu.core_type<tc>, window_params = [{transform_indices = @transform_0, window_bounds = array<i64: 2>}, {transform_indices = @transform_1, window_bounds = array<i64: 1, 2048>}, {transform_indices = @transform_2, window_bounds = array<i64: 1, 2048>}]} {
    %c0 = arith.constant 0 : index
    %c0_0 = arith.constant 0 : index
    %0 = vector.load %arg2[%c0, %c0_0] : memref<1x2048xf32, #tpu.memory_space<vmem>>, vector<1x2048xf32>
    %cst = arith.constant 0.000000e+00 : f32
    %1 = vector.broadcast %cst : f32 to vector<1x2048xf32>
    %2 = arith.maximumf %0, %1 : vector<1x2048xf32>
    %c0_1 = arith.constant 0 : index
    %c0_2 = arith.constant 0 : index
    %3 = vector.load %arg3[%c0_1, %c0_2] : memref<1x2048xf32, #tpu.memory_space<vmem>>, vector<1x2048xf32>
    tpu.vector_store %arg3[%c0_1, %c0_2], %2 {strides = array<i32>} : memref<1x2048xf32, #tpu.memory_space<vmem>>, vector<1x2048xf32>,
    return
  }
  func.func @transform_0(%arg0: i32) -> i32 {
    %c0_i32 = arith.constant 0 : i32
    %c0_i32_0 = arith.constant 0 : i32
    return %c0_i32 : i32
  }
  func.func @transform_1(%arg0: i32) -> (i32, i32) {
    %c0_i32 = arith.constant 0 : i32
    %c0_i32_0 = arith.constant 0 : i32
    return %arg0, %c0_i32 : i32, i32
  }
  func.func @transform_2(%arg0: i32) -> (i32, i32) {
    %c0_i32 = arith.constant 0 : i32
    %c0_i32_0 = arith.constant 0 : i32
    return %arg0, %c0_i32 : i32, i32
  }
}

</mosaic_0001>

<llo_original>
// kernel: tpu_custom_call.1
$region0: #{tpu_custom_call.1}
  #allocation0 [shape = 'u32[]', space=smem, size = 0x4, offset = 0x4, fixed_abs, tag = 'smem constant byte address 0x4 - core index']
  #allocation1 [shape = 'u32[72,128]{1,0:T(1,128)}', space=vmem, size = 0x9000, scoped, tag = 'internal scratch']
  %s0 = inlined_call_operand.hbm [shape: f32[2], index: 0, kind: input, shape index: {}]
  %s1 = inlined_call_operand.hbm [shape: f32[1,2048], index: 1, kind: input, shape index: {}]
  %s2 = inlined_call_operand.hbm [shape: f32[1,2048], index: 2, kind: output, shape index: {}]
  %s3 = sld [smem:[#allocation0]]
  $region26: #{tpu_custom_call.1} parent=0
    _
  %s5 = ssub.s32 1, %s3
  %s6 = scalar_select 0, %s5, %s3
  $region1: #{tpu_custom_call.1} parent=0
    #allocation2 [shape = 'u8[512]{0}', space=smem, size = 0x200, scoped, tag = 'input window, operand 0, single buffered']
    #allocation3 [shape = 's32[1]{0}', space=sflag, size = 0x4, scoped, tag = 'scoped memory for tpu_custom_call.1']
    #allocation4 [shape = 's32[1]{0}', space=sflag, size = 0x4, scoped, tag = 'scoped memory for tpu_custom_call.1']
    #allocation5 [shape = 's32[1]{0}', space=sflag, size = 0x4, scoped, tag = 'scoped memory for tpu_custom_call.1']
    #allocation6 [shape = 'u8[8192]{0}', space=vmem, size = 0x2000, scoped, tag = 'input window, operand 1, single buffered']
    #allocation7 [shape = 'u8[8192]{0}', space=vmem, size = 0x2000, scoped, tag = 'output window, operand 0, single buffered']
    %7 = vsyncpa [#allocation5], 0
    %8 = vsyncpa [#allocation3], 0
    %9 = vsyncpa [#allocation4], 0
    // Predicated region
    $region2: #{tpu_custom_call.1} parent=1 // pred_check
      _
    $region3: #{tpu_custom_call.1} parent=1 // pred_check_branch
      %11 = sbr.rel (0) target = $region5
    $region4: #{tpu_custom_call.1} parent=1 // pred_region
      %13 = vsyncadd [#allocation5], 0
      %s15 = sshll.u32 %s0, 4
      %s16 = int_to_ptr.hbm [resolvable:$true] %s15
      %18 = dma.hbm_to_smem %s16, 16, [#allocation2], [#allocation5]
    $region5: #{tpu_custom_call.1} parent=1 // pred_fallthru
      _
    // Predicated region
    $region6: #{tpu_custom_call.1} parent=1 // pred_check
      _
    $region7: #{tpu_custom_call.1} parent=1 // pred_check_branch
      %20 = sbr.rel (0) target = $region9
    $region8: #{tpu_custom_call.1} parent=1 // pred_region
      %22 = vsyncadd [#allocation3], 0
      %s24 = sshll.u32 %s1, 4
      %s25 = int_to_ptr.hbm [resolvable:$true] %s24
      %s26 = sshll.u32 [#allocation6], 4
      %s27 = int_to_ptr.vmem [resolvable:$true] %s26
      %29 = dma.hbm_to_vmem [thread:$0]  %s25, 256, %s27, [#allocation3]
    $region9: #{tpu_custom_call.1} parent=1 // pred_fallthru
      _
    // Predicated region
    $region10: #{tpu_custom_call.1} parent=1 // pred_check
      _
    $region11: #{tpu_custom_call.1} parent=1 // pred_check_branch
      %31 = sbr.rel (0) target = $region13
    $region12: #{tpu_custom_call.1} parent=1 // pred_region
      %33 = dma.done [#allocation5], 16
    $region13: #{tpu_custom_call.1} parent=1 // pred_fallthru
      _
    // Predicated region
    $region14: #{tpu_custom_call.1} parent=1 // pred_check
      _
    $region15: #{tpu_custom_call.1} parent=1 // pred_check_branch
      %35 = sbr.rel (0) target = $region17
    $region16: #{tpu_custom_call.1} parent=1 // pred_region
      %37 = dma.done [#allocation3], 256
    $region17: #{tpu_custom_call.1} parent=1 // pred_fallthru
      _
    %38 = sfence
    %v39 = vld [vmem:[#allocation6] sm:$0xff]
    %v40 = vld [vmem:[#allocation6 + $0x8] sm:$0xff]
    %v41 = vmax.f32 %v39, 0.0
    %v42 = vmax.f32 %v40, 0.0
    %43 = vst [vmem:[#allocation7] sm:$0xff] %v41
    %44 = vst [vmem:[#allocation7 + $0x8] sm:$0xff] %v42
    // Predicated region
    $region18: #{tpu_custom_call.1} parent=1 // pred_check
      _
    $region19: #{tpu_custom_call.1} parent=1 // pred_check_branch
      %46 = sbr.rel (0) target = $region21
    $region20: #{tpu_custom_call.1} parent=1 // pred_region
      %48 = vsyncadd [#allocation4], 0
      %s50 = sshll.u32 [#allocation7], 4
      %s51 = int_to_ptr.vmem [resolvable:$true] %s50
      %s52 = sshll.u32 %s2, 4
      %s53 = int_to_ptr.hbm [resolvable:$true] %s52
      %55 = dma.vmem_to_hbm [thread:$0]  %s51, 256, %s53, [#allocation4]
    $region21: #{tpu_custom_call.1} parent=1 // pred_fallthru
      _
    // Predicated region
    $region22: #{tpu_custom_call.1} parent=1 // pred_check
      _
    $region23: #{tpu_custom_call.1} parent=1 // pred_check_branch
      %57 = sbr.rel (0) target = $region25
    $region24: #{tpu_custom_call.1} parent=1 // pred_region
      %59 = dma.done [#allocation4], 256
    $region25: #{tpu_custom_call.1} parent=1 // pred_fallthru
      _
    %60 = vsyncpa [#allocation3], 1
    %61 = vsyncpa [#allocation4], 1
    %62 = vsyncpa [#allocation5], 1

</llo_original>
